<compile_context>
chip_gen: v5e
topology: v5e:2x2
jax: 0.10.0
libtpu: 0.0.40
codegen_flags: <defaults>
</compile_context>

<pallas_src>
import functools

import jax
import jax.numpy as jnp
from jax import lax
from jax.experimental import pallas as pl
from jax.experimental.pallas import tpu as pltpu


def _cdiv(a, b):
    return -(-a // b)


def _round_up(a, b):
    return _cdiv(a, b) * b


def _dice_kernel(x_ref, t_ref, cls_ref, inter_ref, psum_ref, tsum_ref,
                 inter_acc, psum_acc, tsum_acc,
                 *, hw, t_s, grid_s, mask_possible):
    # x_ref:   (1, C, t_s, 128) logits (native dtype, cast to f32 in VMEM)
    # t_ref:   (1, t_s, 128)    labels (native narrow int dtype)
    # cls_ref: (C, 1, 128)      int32 class indices (tiny constant input)
    # *_ref:   (1, 1, C, 1)     f32 per-(split, n, c) partial-sum outputs
    # *_acc:   (C, 8, 128)      f32 lane-preserving accumulators (VMEM scratch)
    split = pl.program_id(0)
    j = pl.program_id(2)

    @pl.when(j == 0)
    def _():
        inter_acc[...] = jnp.zeros_like(inter_acc)
        psum_acc[...] = jnp.zeros_like(psum_acc)
        tsum_acc[...] = jnp.zeros_like(tsum_acc)

    x = x_ref[0].astype(jnp.float32)                  # (C, t_s, 128)
    labels = t_ref[0].astype(jnp.int32)               # (t_s, 128)
    cls = cls_ref[...]                                 # (C, 1, 128) int32

    # Numerically-stable softmax over the class axis.  Classes live on the leading
    # (non-tiled) axis, so these reductions are plain cross-vreg VPU max/add, and the
    # exp / approx-reciprocal EUP pushes act on fully dense (t_s, 128) slabs.
    m = jnp.max(x, axis=0, keepdims=True)                                   # (1, t_s, 128)
    e = jnp.exp(x - m)                                                      # (C, t_s, 128)
    p = e * pl.reciprocal(jnp.sum(e, axis=0, keepdims=True), approx=True)   # (C, t_s, 128)

    # One-hot target via broadcast compare against the (C, 1, 128) class-index input.
    onehot = labels[None, :, :] == cls                                      # (C, t_s, 128)

    def _row_sum(v):
        # (C, t_s, 128) -> (C, 8, 128) using tile-aligned slices + VPU adds only
        # (no cross-lane / cross-sublane XLU work in the steady-state loop).
        acc = v[:, 0:8, :]
        for k in range(1, t_s // 8):
            acc = acc + v[:, 8 * k:8 * (k + 1), :]
        return acc

    def _accumulate(p_v, onehot_v):
        oh = onehot_v.astype(jnp.float32)
        inter_acc[...] += _row_sum(p_v * oh)
        psum_acc[...] += _row_sum(p_v)
        tsum_acc[...] += _row_sum(oh)

    if not mask_possible:
        _accumulate(p, onehot)
    else:
        tile_start = (split * grid_s + j) * (t_s * 128)
        full = tile_start + t_s * 128 <= hw

        @pl.when(full)
        def _():
            _accumulate(p, onehot)

        @pl.when(jnp.logical_not(full))
        def _():
            # Tail tile: discard padded / out-of-bounds positions with selects (NOT a
            # multiplicative mask -- garbage lanes can be Inf/NaN after exp).
            row = lax.broadcasted_iota(jnp.int32, (t_s, 128), 0)
            lane = lax.broadcasted_iota(jnp.int32, (t_s, 128), 1)
            valid = (tile_start + row * 128 + lane) < hw                    # (t_s, 128)
            _accumulate(jnp.where(valid[None], p, 0.0),
                        jnp.logical_and(onehot, valid[None]))

    @pl.when(j == grid_s - 1)
    def _():
        # Single cross-sublane + cross-lane reduction per (split, n): epilogue only.
        inter_ref[0, 0] = jnp.sum(jnp.sum(inter_acc[...], axis=1), axis=1, keepdims=True)
        psum_ref[0, 0] = jnp.sum(jnp.sum(psum_acc[...], axis=1), axis=1, keepdims=True)
        tsum_ref[0, 0] = jnp.sum(jnp.sum(tsum_acc[...], axis=1), axis=1, keepdims=True)


def multiclass_dice_loss(logits_nchw, target_nhw, *, max_rows_per_tile=None):
    """loss = 1 - mean_{n,c} dice(softmax(logits)[:, c], onehot(target)[:, c]); smooth=1."""
    n, c, h, w = logits_nchw.shape
    assert target_nhw.shape == (n, h, w), "predict & target shape do not match"
    hw = h * w

    if not jnp.issubdtype(target_nhw.dtype, jnp.integer):
        target_nhw = target_nhw.astype(jnp.int32)
    lbytes = jnp.dtype(logits_nchw.dtype).itemsize
    tbytes = jnp.dtype(target_nhw.dtype).itemsize

    # Sublane-row alignment so packed dtypes (bf16 logits, int8 labels) always see
    # native-granule blocks.
    row_align = max(8, 32 // max(1, lbytes), 32 // max(1, tbytes))

    # VMEM-budgeted tile cap (rows of 128 lanes): biggest tile whose double-buffered
    # blocks + in-flight f32 temporaries stay comfortably inside the scoped VMEM limit
    # on every generation (v5e/v6e 128 MiB, v7x 64 MiB physical).
    budget = 20 * 1024 * 1024
    per_row = (2 * c * 128 * lbytes      # double-buffered logits block
               + 2 * 128 * tbytes        # double-buffered label block
               + 6 * c * 128 * 4)        # in-flight f32 temporaries (softmax / one-hot)
    cap = max(row_align, min(256, (budget // per_row) // row_align * row_align))
    if max_rows_per_tile is not None:
        cap = max(row_align, (max_rows_per_tile // row_align) * row_align)

    s_raw = _cdiv(hw, 128)
    if s_raw <= cap:
        s_dim = _round_up(s_raw, row_align)
        t_s, grid_s, n_split = s_dim, 1, 1
    else:
        s_dim = s_raw
        n_split = 2 if n == 1 else 1     # N==1: split the spatial range over both v7x cores
        t_s = None
        # Prefer a tile that divides S exactly (no masked-tail branch) and, for the
        # split case, yields an even tile count (exact, non-overlapping split ranges).
        cand = cap
        while cand >= max(row_align, cap // 2):
            tiles = _cdiv(s_dim, cand)
            if s_dim % cand == 0 and tiles % n_split == 0:
                t_s = cand
                break
            cand -= row_align
        if t_s is None and n_split == 2:
            cand = cap
            while cand >= max(row_align, cap // 2):
                if _cdiv(s_dim, cand) % 2 == 0:
                    t_s = cand
                    break
                cand -= row_align
        if t_s is None:
            t_s = cap
            if n_split == 2 and _cdiv(s_dim, t_s) % 2 != 0:
                n_split = 1
        grid_s = _cdiv(s_dim, t_s) // n_split

    hw_pad = s_dim * 128
    mask_possible = (n_split * grid_s * t_s * 128) != hw

    # Free (metadata-only) reshapes for the common aligned case; zero-pad (one extra
    # XLA pass) only when H*W is not already a multiple of 128*row_align.
    x = logits_nchw.reshape(n, c, hw)
    t = target_nhw.reshape(n, hw)
    if hw_pad != hw:
        x = jnp.pad(x, ((0, 0), (0, 0), (0, hw_pad - hw)))
        t = jnp.pad(t, ((0, 0), (0, hw_pad - hw)))
    x = x.reshape(n, c, s_dim, 128)
    t = t.reshape(n, s_dim, 128)
    cls_arr = jnp.broadcast_to(
        jnp.arange(c, dtype=jnp.int32).reshape(c, 1, 1), (c, 1, 128))

    kernel = functools.partial(_dice_kernel, hw=hw, t_s=t_s, grid_s=grid_s,
                               mask_possible=mask_possible)

    vmem_need = per_row * t_s + 3 * c * 8 * 128 * 4
    vmem_limit = int(min(40 * 1024 * 1024, max(32 * 1024 * 1024, 2 * vmem_need)))

    out_shape = tuple(jax.ShapeDtypeStruct((n_split, n, c, 1), jnp.float32)
                      for _ in range(3))
    partial_spec = pl.BlockSpec((1, 1, c, 1), lambda sp, ni, j: (sp, ni, 0, 0))

    inter, psum, tsum = pl.pallas_call(
        kernel,
        out_shape=out_shape,
        grid_spec=pltpu.PrefetchScalarGridSpec(
            num_scalar_prefetch=0,
            grid=(n_split, n, grid_s),
            in_specs=[
                pl.BlockSpec((1, c, t_s, 128),
                             lambda sp, ni, j: (ni, 0, sp * grid_s + j, 0)),
                pl.BlockSpec((1, t_s, 128),
                             lambda sp, ni, j: (ni, sp * grid_s + j, 0)),
                pl.BlockSpec((c, 1, 128),
                             lambda sp, ni, j: (0, 0, 0)),
            ],
            out_specs=[partial_spec, partial_spec, partial_spec],
            scratch_shapes=[pltpu.VMEM((c, 8, 128), jnp.float32)] * 3,
        ),
        compiler_params=pltpu.CompilerParams(
            dimension_semantics=("parallel", "parallel", "arbitrary"),
            vmem_limit_bytes=vmem_limit),
    )(x, t, cls_arr)

    # Tiny (n_split, N, C) glue: combine the spatial-split partials and finish the dice.
    inter = inter.sum(axis=0)[..., 0]                   # (N, C)
    psum = psum.sum(axis=0)[..., 0]
    tsum = tsum.sum(axis=0)[..., 0]
    smooth = jnp.float32(1.0)
    dice = (2.0 * inter + smooth) / (psum + tsum + smooth)
    # total_loss = (1/C) * sum_c [1 - (1/N) * sum_n dice[n, c]]  ==  1 - mean(dice)
    return 1.0 - jnp.mean(dice)


def _reference_loss(logits_nchw, target_nhw):
    # Pure-JAX reference mirroring the PyTorch forward exactly.
    n, c, h, w = logits_nchw.shape
    p = jax.nn.softmax(logits_nchw.astype(jnp.float32), axis=1)
    onehot = jax.nn.one_hot(target_nhw, c, axis=1, dtype=jnp.float32)
    pf = p.reshape(n, c, -1)
    tf = onehot.reshape(n, c, -1)
    inter = (pf * tf).sum(-1)
    dice = (2.0 * inter + 1.0) / (pf.sum(-1) + tf.sum(-1) + 1.0)
    return 1.0 - jnp.mean(dice)


if __name__ == "__main__":
    keys = jax.random.split(jax.random.PRNGKey(0), 6)

    # Case 1: small aligned shape, bf16 logits, single (padded + masked) tile.
    N, C, H, W = 2, 4, 16, 16
    logits = jax.random.normal(keys[0], (N, C, H, W), dtype=jnp.bfloat16)
    target = jax.random.randint(keys[1], (N, H, W), 0, C, dtype=jnp.int32)
    loss = jax.block_until_ready(multiclass_dice_loss(logits, target))
    ref = _reference_loss(logits, target)
    assert jnp.allclose(loss, ref, rtol=5e-3, atol=5e-3), (loss, ref)

    # Case 2: multi-tile streaming with a masked tail tile and narrow int8 labels.
    N2, C2, H2, W2 = 2, 3, 80, 80            # HW = 6400 = 50 rows of 128 lanes
    logits2 = jax.random.normal(keys[2], (N2, C2, H2, W2), dtype=jnp.float32)
    target2 = jax.random.randint(keys[3], (N2, H2, W2), 0, C2,
                                 dtype=jnp.int32).astype(jnp.int8)
    loss2 = jax.block_until_ready(
        multiclass_dice_loss(logits2, target2, max_rows_per_tile=32))
    ref2 = _reference_loss(logits2, target2.astype(jnp.int32))
    assert jnp.allclose(loss2, ref2, rtol=5e-3, atol=5e-3), (loss2, ref2)

    # Case 3: N == 1 -> 2-way spatial split (leading "parallel" axis; both v7x cores).
    N3, C3, H3, W3 = 1, 4, 64, 64            # HW = 4096 = 32 rows of 128 lanes
    logits3 = jax.random.normal(keys[4], (N3, C3, H3, W3), dtype=jnp.float32)
    target3 = jax.random.randint(keys[5], (N3, H3, W3), 0, C3, dtype=jnp.int32)
    loss3 = jax.block_until_ready(
        multiclass_dice_loss(logits3, target3, max_rows_per_tile=8))
    ref3 = _reference_loss(logits3, target3)
    assert jnp.allclose(loss3, ref3, rtol=5e-3, atol=5e-3), (loss3, ref3)

    print("KERNEL_OK")
</pallas_src>

<mosaic_0001>
module attributes {stable_mosaic.version = 11 : i64} {
  func.func @_dice_kernel(%arg0: i32, %arg1: i32, %arg2: i32, %arg3: memref<1x4x16x128xbf16, #tpu.memory_space<vmem>>, %arg4: memref<1x16x128xi32, #tpu.memory_space<vmem>>, %arg5: memref<4x1x128xi32, #tpu.memory_space<vmem>>, %arg6: memref<1x1x4x1xf32, #tpu.memory_space<vmem>>, %arg7: memref<1x1x4x1xf32, #tpu.memory_space<vmem>>, %arg8: memref<1x1x4x1xf32, #tpu.memory_space<vmem>>, %arg9: memref<4x8x128xf32, #tpu.memory_space<vmem>>, %arg10: memref<4x8x128xf32, #tpu.memory_space<vmem>>, %arg11: memref<4x8x128xf32, #tpu.memory_space<vmem>>) attributes {dimension_semantics = [#tpu.dimension_semantics<parallel>, #tpu.dimension_semantics<parallel>, #tpu.dimension_semantics<arbitrary>], iteration_bounds = array<i64: 1, 2, 1>, scalar_prefetch = 0 : i64, scratch_operands = 3 : i64, tpu.core_type = #tpu.core_type<tc>, window_params = [{transform_indices = @transform_0, window_bounds = array<i64: 1, 4, 16, 128>}, {transform_indices = @transform_1, window_bounds = array<i64: 1, 16, 128>}, {pipeline_mode = #tpu.pipeline_mode<synchronous>, transform_indices = @transform_2, window_bounds = array<i64: 4, 1, 128>}, {transform_indices = @transform_3, window_bounds = array<i64: 1, 1, 4, 1>}, {transform_indices = @transform_4, window_bounds = array<i64: 1, 1, 4, 1>}, {transform_indices = @transform_5, window_bounds = array<i64: 1, 1, 4, 1>}]} {
    %c0_i32 = arith.constant 0 : i32
    %0 = arith.cmpi eq, %arg2, %c0_i32 : i32
    %1 = arith.extui %0 : i1 to i32
    %c0_i32_0 = arith.constant 0 : i32
    %2 = arith.cmpi ne, %1, %c0_i32_0 : i32
    scf.if %2 {
      %cst_16 = arith.constant 0.000000e+00 : f32
      %36 = vector.broadcast %cst_16 : f32 to vector<4x8x128xf32>
      %c0_17 = arith.constant 0 : index
      %c0_18 = arith.constant 0 : index
      %c0_19 = arith.constant 0 : index
      %37 = vector.load %arg9[%c0_17, %c0_18, %c0_19] : memref<4x8x128xf32, #tpu.memory_space<vmem>>, vector<4x8x128xf32>
      tpu.vector_store %arg9[%c0_17, %c0_18, %c0_19], %36 {strides = array<i32>} : memref<4x8x128xf32, #tpu.memory_space<vmem>>, vector<4x8x128xf32>,
      %cst_20 = arith.constant 0.000000e+00 : f32
      %38 = vector.broadcast %cst_20 : f32 to vector<4x8x128xf32>
      %c0_21 = arith.constant 0 : index
      %c0_22 = arith.constant 0 : index
      %c0_23 = arith.constant 0 : index
      %39 = vector.load %arg10[%c0_21, %c0_22, %c0_23] : memref<4x8x128xf32, #tpu.memory_space<vmem>>, vector<4x8x128xf32>
      tpu.vector_store %arg10[%c0_21, %c0_22, %c0_23], %38 {strides = array<i32>} : memref<4x8x128xf32, #tpu.memory_space<vmem>>, vector<4x8x128xf32>,
      %cst_24 = arith.constant 0.000000e+00 : f32
      %40 = vector.broadcast %cst_24 : f32 to vector<4x8x128xf32>
      %c0_25 = arith.constant 0 : index
      %c0_26 = arith.constant 0 : index
      %c0_27 = arith.constant 0 : index
      %41 = vector.load %arg11[%c0_25, %c0_26, %c0_27] : memref<4x8x128xf32, #tpu.memory_space<vmem>>, vector<4x8x128xf32>
      tpu.vector_store %arg11[%c0_25, %c0_26, %c0_27], %40 {strides = array<i32>} : memref<4x8x128xf32, #tpu.memory_space<vmem>>, vector<4x8x128xf32>,
    } else {
    }
    %c0 = arith.constant 0 : index
    %c0_1 = arith.constant 0 : index
    %c0_2 = arith.constant 0 : index
    %c0_3 = arith.constant 0 : index
    %3 = vector.load %arg3[%c0, %c0_1, %c0_2, %c0_3] : memref<1x4x16x128xbf16, #tpu.memory_space<vmem>>, vector<1x4x16x128xbf16>
    %4 = vector.shape_cast %3 : vector<1x4x16x128xbf16> to vector<4x16x128xbf16>
    %5 = arith.extf %4 : vector<4x16x128xbf16> to vector<4x16x128xf32>
    %c0_4 = arith.constant 0 : index
    %c0_5 = arith.constant 0 : index
    %c0_6 = arith.constant 0 : index
    %6 = vector.load %arg4[%c0_4, %c0_5, %c0_6] : memref<1x16x128xi32, #tpu.memory_space<vmem>>, vector<1x16x128xi32>
    %7 = vector.shape_cast %6 : vector<1x16x128xi32> to vector<16x128xi32>
    %c0_7 = arith.constant 0 : index
    %c0_8 = arith.constant 0 : index
    %c0_9 = arith.constant 0 : index
    %8 = vector.load %arg5[%c0_7, %c0_8, %c0_9] : memref<4x1x128xi32, #tpu.memory_space<vmem>>, vector<4x1x128xi32>
    %cst = arith.constant dense<0xFF800000> : vector<16x128xf32>
    %9 = vector.multi_reduction <maximumf>, %5, %cst [0] : vector<4x16x128xf32> to vector<16x128xf32>
    %10 = vector.shape_cast %9 : vector<16x128xf32> to vector<1x16x128xf32>
    %11 = vector.broadcast %10 : vector<1x16x128xf32> to vector<4x16x128xf32>
    %12 = arith.subf %5, %11 : vector<4x16x128xf32>
    %13 = math.exp %12 : vector<4x16x128xf32>
    %cst_10 = arith.constant dense<0.000000e+00> : vector<16x128xf32>
    %14 = vector.multi_reduction <add>, %13, %cst_10 [0] : vector<4x16x128xf32> to vector<16x128xf32>
    %15 = vector.shape_cast %14 : vector<16x128xf32> to vector<1x16x128xf32>
    %16 = tpu.reciprocal %15 {approx = true} : vector<1x16x128xf32> -> vector<1x16x128xf32>
    %17 = vector.broadcast %16 : vector<1x16x128xf32> to vector<4x16x128xf32>
    %18 = arith.mulf %13, %17 : vector<4x16x128xf32>
    %19 = vector.shape_cast %7 : vector<16x128xi32> to vector<1x16x128xi32>
    %20 = vector.broadcast %19 : vector<1x16x128xi32> to vector<4x16x128xi32>
    %21 = vector.broadcast %8 : vector<4x1x128xi32> to vector<4x16x128xi32>
    %22 = arith.cmpi eq, %20, %21 : vector<4x16x128xi32>
    %c1_i32 = arith.constant 1 : i32
    %23 = arith.muli %arg0, %c1_i32 : i32
    %24 = arith.addi %23, %arg2 : i32
    %c2048_i32 = arith.constant 2048 : i32
    %25 = arith.muli %24, %c2048_i32 : i32
    %c2048_i32_11 = arith.constant 2048 : i32
    %26 = arith.addi %25, %c2048_i32_11 : i32
    %c256_i32 = arith.constant 256 : i32
    %27 = arith.cmpi sle, %26, %c256_i32 : i32
    %28 = arith.extui %27 : i1 to i32
    %c0_i32_12 = arith.constant 0 : i32
    %29 = arith.cmpi ne, %28, %c0_i32_12 : i32
    scf.if %29 {
      %36 = arith.extui %22 : vector<4x16x128xi1> to vector<4x16x128xi32>
      %37 = arith.sitofp %36 : vector<4x16x128xi32> to vector<4x16x128xf32>
      %c0_16 = arith.constant 0 : index
      %c0_17 = arith.constant 0 : index
      %c0_18 = arith.constant 0 : index
      %38 = vector.load %arg9[%c0_16, %c0_17, %c0_18] : memref<4x8x128xf32, #tpu.memory_space<vmem>>, vector<4x8x128xf32>
      %39 = arith.mulf %18, %37 : vector<4x16x128xf32>
      %40 = vector.extract_strided_slice %39 {offsets = [0, 0, 0], sizes = [4, 8, 128], strides = [1, 1, 1]} : vector<4x16x128xf32> to vector<4x8x128xf32>
      %41 = vector.extract_strided_slice %39 {offsets = [0, 8, 0], sizes = [4, 8, 128], strides = [1, 1, 1]} : vector<4x16x128xf32> to vector<4x8x128xf32>
      %42 = arith.addf %40, %41 : vector<4x8x128xf32>
      %43 = arith.addf %38, %42 : vector<4x8x128xf32>
      %c0_19 = arith.constant 0 : index
      %c0_20 = arith.constant 0 : index
      %c0_21 = arith.constant 0 : index
      %44 = vector.load %arg9[%c0_19, %c0_20, %c0_21] : memref<4x8x128xf32, #tpu.memory_space<vmem>>, vector<4x8x128xf32>
      tpu.vector_store %arg9[%c0_19, %c0_20, %c0_21], %43 {strides = array<i32>} : memref<4x8x128xf32, #tpu.memory_space<vmem>>, vector<4x8x128xf32>,
      %c0_22 = arith.constant 0 : index
      %c0_23 = arith.constant 0 : index
      %c0_24 = arith.constant 0 : index
      %45 = vector.load %arg10[%c0_22, %c0_23, %c0_24] : memref<4x8x128xf32, #tpu.memory_space<vmem>>, vector<4x8x128xf32>
      %46 = vector.extract_strided_slice %18 {offsets = [0, 0, 0], sizes = [4, 8, 128], strides = [1, 1, 1]} : vector<4x16x128xf32> to vector<4x8x128xf32>
      %47 = vector.extract_strided_slice %18 {offsets = [0, 8, 0], sizes = [4, 8, 128], strides = [1, 1, 1]} : vector<4x16x128xf32> to vector<4x8x128xf32>
      %48 = arith.addf %46, %47 : vector<4x8x128xf32>
      %49 = arith.addf %45, %48 : vector<4x8x128xf32>
      %c0_25 = arith.constant 0 : index
      %c0_26 = arith.constant 0 : index
      %c0_27 = arith.constant 0 : index
      %50 = vector.load %arg10[%c0_25, %c0_26, %c0_27] : memref<4x8x128xf32, #tpu.memory_space<vmem>>, vector<4x8x128xf32>
      tpu.vector_store %arg10[%c0_25, %c0_26, %c0_27], %49 {strides = array<i32>} : memref<4x8x128xf32, #tpu.memory_space<vmem>>, vector<4x8x128xf32>,
      %c0_28 = arith.constant 0 : index
      %c0_29 = arith.constant 0 : index
      %c0_30 = arith.constant 0 : index
      %51 = vector.load %arg11[%c0_28, %c0_29, %c0_30] : memref<4x8x128xf32, #tpu.memory_space<vmem>>, vector<4x8x128xf32>
      %52 = vector.extract_strided_slice %37 {offsets = [0, 0, 0], sizes = [4, 8, 128], strides = [1, 1, 1]} : vector<4x16x128xf32> to vector<4x8x128xf32>
      %53 = vector.extract_strided_slice %37 {offsets = [0, 8, 0], sizes = [4, 8, 128], strides = [1, 1, 1]} : vector<4x16x128xf32> to vector<4x8x128xf32>
      %54 = arith.addf %52, %53 : vector<4x8x128xf32>
      %55 = arith.addf %51, %54 : vector<4x8x128xf32>
      %c0_31 = arith.constant 0 : index
      %c0_32 = arith.constant 0 : index
      %c0_33 = arith.constant 0 : index
      %56 = vector.load %arg11[%c0_31, %c0_32, %c0_33] : memref<4x8x128xf32, #tpu.memory_space<vmem>>, vector<4x8x128xf32>
      tpu.vector_store %arg11[%c0_31, %c0_32, %c0_33], %55 {strides = array<i32>} : memref<4x8x128xf32, #tpu.memory_space<vmem>>, vector<4x8x128xf32>,
    } else {
    }
    %true = arith.constant true
    %30 = arith.xori %27, %true : i1
    %31 = arith.extui %30 : i1 to i32
    %c0_i32_13 = arith.constant 0 : i32
    %32 = arith.cmpi ne, %31, %c0_i32_13 : i32
    scf.if %32 {
      %36 = tpu.iota {dimensions = array<i32: 0>} : vector<16x128xi32>
      %37 = tpu.iota {dimensions = array<i32: 1>} : vector<16x128xi32>
      %c128_i32 = arith.constant 128 : i32
      %38 = vector.broadcast %c128_i32 : i32 to vector<16x128xi32>
      %39 = arith.muli %36, %38 : vector<16x128xi32>
      %40 = vector.broadcast %25 : i32 to vector<16x128xi32>
      %41 = arith.addi %40, %39 : vector<16x128xi32>
      %42 = arith.addi %41, %37 : vector<16x128xi32>
      %c256_i32_16 = arith.constant 256 : i32
      %43 = vector.broadcast %c256_i32_16 : i32 to vector<16x128xi32>
      %44 = arith.cmpi slt, %42, %43 : vector<16x128xi32>
      %45 = vector.shape_cast %44 : vector<16x128xi1> to vector<1x16x128xi1>
      %cst_17 = arith.constant 0.000000e+00 : f32
      %46 = vector.shape_cast %45 : vector<1x16x128xi1> to vector<1x16x128xi1>
      %47 = vector.broadcast %46 : vector<1x16x128xi1> to vector<4x16x128xi1>
      %48 = vector.broadcast %cst_17 : f32 to vector<4x16x128xf32>
      %49 = arith.select %47, %18, %48 : vector<4x16x128xi1>, vector<4x16x128xf32>
      %50 = vector.shape_cast %44 : vector<16x128xi1> to vector<1x16x128xi1>
      %51 = vector.broadcast %50 : vector<1x16x128xi1> to vector<4x16x128xi1>
      %52 = arith.andi %22, %51 : vector<4x16x128xi1>
      %53 = arith.extui %52 : vector<4x16x128xi1> to vector<4x16x128xi32>
      %54 = arith.sitofp %53 : vector<4x16x128xi32> to vector<4x16x128xf32>
      %c0_18 = arith.constant 0 : index
      %c0_19 = arith.constant 0 : index
      %c0_20 = arith.constant 0 : index
      %55 = vector.load %arg9[%c0_18, %c0_19, %c0_20] : memref<4x8x128xf32, #tpu.memory_space<vmem>>, vector<4x8x128xf32>
      %56 = arith.mulf %49, %54 : vector<4x16x128xf32>
      %57 = vector.extract_strided_slice %56 {offsets = [0, 0, 0], sizes = [4, 8, 128], strides = [1, 1, 1]} : vector<4x16x128xf32> to vector<4x8x128xf32>
      %58 = vector.extract_strided_slice %56 {offsets = [0, 8, 0], sizes = [4, 8, 128], strides = [1, 1, 1]} : vector<4x16x128xf32> to vector<4x8x128xf32>
      %59 = arith.addf %57, %58 : vector<4x8x128xf32>
      %60 = arith.addf %55, %59 : vector<4x8x128xf32>
      %c0_21 = arith.constant 0 : index
      %c0_22 = arith.constant 0 : index
      %c0_23 = arith.constant 0 : index
      %61 = vector.load %arg9[%c0_21, %c0_22, %c0_23] : memref<4x8x128xf32, #tpu.memory_space<vmem>>, vector<4x8x128xf32>
      tpu.vector_store %arg9[%c0_21, %c0_22, %c0_23], %60 {strides = array<i32>} : memref<4x8x128xf32, #tpu.memory_space<vmem>>, vector<4x8x128xf32>,
      %c0_24 = arith.constant 0 : index
      %c0_25 = arith.constant 0 : index
      %c0_26 = arith.constant 0 : index
      %62 = vector.load %arg10[%c0_24, %c0_25, %c0_26] : memref<4x8x128xf32, #tpu.memory_space<vmem>>, vector<4x8x128xf32>
      %63 = vector.extract_strided_slice %49 {offsets = [0, 0, 0], sizes = [4, 8, 128], strides = [1, 1, 1]} : vector<4x16x128xf32> to vector<4x8x128xf32>
      %64 = vector.extract_strided_slice %49 {offsets = [0, 8, 0], sizes = [4, 8, 128], strides = [1, 1, 1]} : vector<4x16x128xf32> to vector<4x8x128xf32>
      %65 = arith.addf %63, %64 : vector<4x8x128xf32>
      %66 = arith.addf %62, %65 : vector<4x8x128xf32>
      %c0_27 = arith.constant 0 : index
      %c0_28 = arith.constant 0 : index
      %c0_29 = arith.constant 0 : index
      %67 = vector.load %arg10[%c0_27, %c0_28, %c0_29] : memref<4x8x128xf32, #tpu.memory_space<vmem>>, vector<4x8x128xf32>
      tpu.vector_store %arg10[%c0_27, %c0_28, %c0_29], %66 {strides = array<i32>} : memref<4x8x128xf32, #tpu.memory_space<vmem>>, vector<4x8x128xf32>,
      %c0_30 = arith.constant 0 : index
      %c0_31 = arith.constant 0 : index
      %c0_32 = arith.constant 0 : index
      %68 = vector.load %arg11[%c0_30, %c0_31, %c0_32] : memref<4x8x128xf32, #tpu.memory_space<vmem>>, vector<4x8x128xf32>
      %69 = vector.extract_strided_slice %54 {offsets = [0, 0, 0], sizes = [4, 8, 128], strides = [1, 1, 1]} : vector<4x16x128xf32> to vector<4x8x128xf32>
      %70 = vector.extract_strided_slice %54 {offsets = [0, 8, 0], sizes = [4, 8, 128], strides = [1, 1, 1]} : vector<4x16x128xf32> to vector<4x8x128xf32>
      %71 = arith.addf %69, %70 : vector<4x8x128xf32>
      %72 = arith.addf %68, %71 : vector<4x8x128xf32>
      %c0_33 = arith.constant 0 : index
      %c0_34 = arith.constant 0 : index
      %c0_35 = arith.constant 0 : index
      %73 = vector.load %arg11[%c0_33, %c0_34, %c0_35] : memref<4x8x128xf32, #tpu.memory_space<vmem>>, vector<4x8x128xf32>
      tpu.vector_store %arg11[%c0_33, %c0_34, %c0_35], %72 {strides = array<i32>} : memref<4x8x128xf32, #tpu.memory_space<vmem>>, vector<4x8x128xf32>,
    } else {
    }
    %c0_i32_14 = arith.constant 0 : i32
    %33 = arith.cmpi eq, %arg2, %c0_i32_14 : i32
    %34 = arith.extui %33 : i1 to i32
    %c0_i32_15 = arith.constant 0 : i32
    %35 = arith.cmpi ne, %34, %c0_i32_15 : i32
    scf.if %35 {
      %c0_16 = arith.constant 0 : index
      %c0_17 = arith.constant 0 : index
      %c0_18 = arith.constant 0 : index
      %36 = vector.load %arg9[%c0_16, %c0_17, %c0_18] : memref<4x8x128xf32, #tpu.memory_space<vmem>>, vector<4x8x128xf32>
      %cst_19 = arith.constant dense<0.000000e+00> : vector<4x128xf32>
      %37 = vector.multi_reduction <add>, %36, %cst_19 [1] : vector<4x8x128xf32> to vector<4x128xf32>
      %cst_20 = arith.constant dense<0.000000e+00> : vector<4xf32>
      %38 = vector.multi_reduction <add>, %37, %cst_20 [1] : vector<4x128xf32> to vector<4xf32>
      %39 = vector.shape_cast %38 : vector<4xf32> to vector<4x1xf32>
      %c0_21 = arith.constant 0 : index
      %c0_22 = arith.constant 0 : index
      %c0_23 = arith.constant 0 : index
      %c0_24 = arith.constant 0 : index
      %40 = vector.load %arg6[%c0_21, %c0_22, %c0_23, %c0_24] : memref<1x1x4x1xf32, #tpu.memory_space<vmem>>, vector<1x1x4x1xf32>
      %41 = vector.shape_cast %40 : vector<1x1x4x1xf32> to vector<4x1xf32>
      %42 = vector.shape_cast %39 : vector<4x1xf32> to vector<1x1x4x1xf32>
      tpu.vector_store %arg6[%c0_21, %c0_22, %c0_23, %c0_24], %42 {strides = array<i32>} : memref<1x1x4x1xf32, #tpu.memory_space<vmem>>, vector<1x1x4x1xf32>,
      %c0_25 = arith.constant 0 : index
      %c0_26 = arith.constant 0 : index
      %c0_27 = arith.constant 0 : index
      %43 = vector.load %arg10[%c0_25, %c0_26, %c0_27] : memref<4x8x128xf32, #tpu.memory_space<vmem>>, vector<4x8x128xf32>
      %cst_28 = arith.constant dense<0.000000e+00> : vector<4x128xf32>
      %44 = vector.multi_reduction <add>, %43, %cst_28 [1] : vector<4x8x128xf32> to vector<4x128xf32>
      %cst_29 = arith.constant dense<0.000000e+00> : vector<4xf32>
      %45 = vector.multi_reduction <add>, %44, %cst_29 [1] : vector<4x128xf32> to vector<4xf32>
      %46 = vector.shape_cast %45 : vector<4xf32> to vector<4x1xf32>
      %c0_30 = arith.constant 0 : index
      %c0_31 = arith.constant 0 : index
      %c0_32 = arith.constant 0 : index
      %c0_33 = arith.constant 0 : index
      %47 = vector.load %arg7[%c0_30, %c0_31, %c0_32, %c0_33] : memref<1x1x4x1xf32, #tpu.memory_space<vmem>>, vector<1x1x4x1xf32>
      %48 = vector.shape_cast %47 : vector<1x1x4x1xf32> to vector<4x1xf32>
      %49 = vector.shape_cast %46 : vector<4x1xf32> to vector<1x1x4x1xf32>
      tpu.vector_store %arg7[%c0_30, %c0_31, %c0_32, %c0_33], %49 {strides = array<i32>} : memref<1x1x4x1xf32, #tpu.memory_space<vmem>>, vector<1x1x4x1xf32>,
      %c0_34 = arith.constant 0 : index
      %c0_35 = arith.constant 0 : index
      %c0_36 = arith.constant 0 : index
      %50 = vector.load %arg11[%c0_34, %c0_35, %c0_36] : memref<4x8x128xf32, #tpu.memory_space<vmem>>, vector<4x8x128xf32>
      %cst_37 = arith.constant dense<0.000000e+00> : vector<4x128xf32>
      %51 = vector.multi_reduction <add>, %50, %cst_37 [1] : vector<4x8x128xf32> to vector<4x128xf32>
      %cst_38 = arith.constant dense<0.000000e+00> : vector<4xf32>
      %52 = vector.multi_reduction <add>, %51, %cst_38 [1] : vector<4x128xf32> to vector<4xf32>
      %53 = vector.shape_cast %52 : vector<4xf32> to vector<4x1xf32>
      %c0_39 = arith.constant 0 : index
      %c0_40 = arith.constant 0 : index
      %c0_41 = arith.constant 0 : index
      %c0_42 = arith.constant 0 : index
      %54 = vector.load %arg8[%c0_39, %c0_40, %c0_41, %c0_42] : memref<1x1x4x1xf32, #tpu.memory_space<vmem>>, vector<1x1x4x1xf32>
      %55 = vector.shape_cast %54 : vector<1x1x4x1xf32> to vector<4x1xf32>
      %56 = vector.shape_cast %53 : vector<4x1xf32> to vector<1x1x4x1xf32>
      tpu.vector_store %arg8[%c0_39, %c0_40, %c0_41, %c0_42], %56 {strides = array<i32>} : memref<1x1x4x1xf32, #tpu.memory_space<vmem>>, vector<1x1x4x1xf32>,
    } else {
    }
    return
  }
  func.func @transform_0(%arg0: i32, %arg1: i32, %arg2: i32) -> (i32, i32, i32, i32) {
    %c1_i32 = arith.constant 1 : i32
    %0 = arith.muli %arg0, %c1_i32 : i32
    %1 = arith.addi %0, %arg2 : i32
    %c0_i32 = arith.constant 0 : i32
    %c0_i32_0 = arith.constant 0 : i32
    %c0_i32_1 = arith.constant 0 : i32
    return %arg1, %c0_i32, %1, %c0_i32_0 : i32, i32, i32, i32
  }
  func.func @transform_1(%arg0: i32, %arg1: i32, %arg2: i32) -> (i32, i32, i32) {
    %c1_i32 = arith.constant 1 : i32
    %0 = arith.muli %arg0, %c1_i32 : i32
    %1 = arith.addi %0, %arg2 : i32
    %c0_i32 = arith.constant 0 : i32
    %c0_i32_0 = arith.constant 0 : i32
    return %arg1, %1, %c0_i32 : i32, i32, i32
  }
  func.func @transform_2(%arg0: i32, %arg1: i32, %arg2: i32) -> (i32, i32, i32) {
    %c0_i32 = arith.constant 0 : i32
    %c0_i32_0 = arith.constant 0 : i32
    %c0_i32_1 = arith.constant 0 : i32
    %c0_i32_2 = arith.constant 0 : i32
    return %c0_i32, %c0_i32_0, %c0_i32_1 : i32, i32, i32
  }
  func.func @transform_3(%arg0: i32, %arg1: i32, %arg2: i32) -> (i32, i32, i32, i32) {
    %c0_i32 = arith.constant 0 : i32
    %c0_i32_0 = arith.constant 0 : i32
    %c0_i32_1 = arith.constant 0 : i32
    return %arg0, %arg1, %c0_i32, %c0_i32_0 : i32, i32, i32, i32
  }
  func.func @transform_4(%arg0: i32, %arg1: i32, %arg2: i32) -> (i32, i32, i32, i32) {
    %c0_i32 = arith.constant 0 : i32
    %c0_i32_0 = arith.constant 0 : i32
    %c0_i32_1 = arith.constant 0 : i32
    return %arg0, %arg1, %c0_i32, %c0_i32_0 : i32, i32, i32, i32
  }
  func.func @transform_5(%arg0: i32, %arg1: i32, %arg2: i32) -> (i32, i32, i32, i32) {
    %c0_i32 = arith.constant 0 : i32
    %c0_i32_0 = arith.constant 0 : i32
    %c0_i32_1 = arith.constant 0 : i32
    return %arg0, %arg1, %c0_i32, %c0_i32_0 : i32, i32, i32, i32
  }
}

</mosaic_0001>

<llo_original>
// kernel: tpu_custom_call.1
$region0: #{tpu_custom_call.1}
  #allocation0 [shape = 'u32[]', space=smem, size = 0x4, offset = 0x4, fixed_abs, tag = 'smem constant byte address 0x4 - core index']
  #allocation1 [shape = 'u32[72,128]{1,0:T(1,128)}', space=vmem, size = 0x9000, scoped, tag = 'internal scratch']
  #allocation2 [shape = 'f32[4,8,128]{2,1,0:T(8,128)}', space=vmem, size = 0x4000, scoped, tag = 'scratch operand']
  #allocation3 [shape = 'f32[4,8,128]{2,1,0:T(8,128)}', space=vmem, size = 0x4000, scoped, tag = 'scratch operand']
  #allocation4 [shape = 'f32[4,8,128]{2,1,0:T(8,128)}', space=vmem, size = 0x4000, scoped, tag = 'scratch operand']
  %s0 = inlined_call_operand.hbm [shape: bf16[2,4,16,128], index: 0, kind: input, shape index: {}]
  %s1 = inlined_call_operand.hbm [shape: s32[2,16,128], index: 1, kind: input, shape index: {}]
  %s2 = inlined_call_operand.hbm [shape: s32[4,1,128], index: 2, kind: input, shape index: {}]
  %s3 = inlined_call_operand.vmem [shape: f32[1,2,4,1], index: 3, kind: output, shape index: {0}]
  %s4 = inlined_call_operand.vmem [shape: f32[1,2,4,1], index: 4, kind: output, shape index: {1}]
  %s5 = inlined_call_operand.vmem [shape: f32[1,2,4,1], index: 5, kind: output, shape index: {2}]
  %6 = xla_tuple %s3, %s4, %s5
  %s7 = sld [smem:[#allocation0]]
  $region89: #{tpu_custom_call.1} parent=0
    _
  %s9 = ssub.s32 1, %s7
  %s10 = scalar_select 0, %s9, %s7
  $region1: #{tpu_custom_call.1} parent=0
    #allocation5 [shape = 'u8[32768]{0}', space=vmem, size = 0x8000, scoped, tag = 'input window, operand 0']
    #allocation6 [shape = 's32[2]{0}', space=sflag, size = 0x8, scoped, tag = 'scoped memory for tpu_custom_call.1']
    #allocation7 [shape = 'u8[16384]{0}', space=vmem, size = 0x4000, scoped, tag = 'input window, operand 1']
    #allocation8 [shape = 's32[2]{0}', space=sflag, size = 0x8, scoped, tag = 'scoped memory for tpu_custom_call.1']
    #allocation9 [shape = 'u8[2048]{0}', space=vmem, size = 0x800, scoped, tag = 'input window, operand 2, single buffered']
    %11 = vsyncpa [#allocation6], 0
    %s12 = scalar_lea.sflag [#allocation6], 1
    %13 = vsyncpa %s12, 0
    %14 = vsyncpa [#allocation8], 0
    %s15 = scalar_lea.sflag [#allocation8], 1
    %16 = vsyncpa %s15, 0
    loop: start=0, step=1, limit=4
    $region2: #{tpu_custom_call.1} parent=1 // loop_pre_header
      _
    $region3: #{tpu_custom_call.1} parent=1 // loop_header
      %s18 = sphi 0, %s22
      %p19 = scmp.ge.s32.totalorder %s18, 4
      %s25 = sphi 0, %s44
      %s26 = sphi 0, %s40
      %s27 = sphi 0, %s36
      %s28 = sphi 0, %s25
      %s29 = sphi 0, %s26
      %s30 = sphi 0, %s27
      %s31 = sphi 0, %s28
      %s32 = sphi 0, %s29
      %s33 = sphi 0, %s30
      %s51 = sphi 0, %s53
      %s54 = sphi 0, %s51
      %s55 = sphi 0, %s54
      %s71 = sphi 0, %s55
      %s81 = sphi 0, %s83
      %s84 = sphi 0, %s81
      %s85 = sphi 0, %s84
      %s101 = sphi 0, %s85
      %s105 = sphi 0, %s105
      %s107 = sphi 0, %s105
      %s108 = sphi 0, %s107
      %s122 = sphi 0, %s108
      %s130 = sphi 0, %s132
      %s133 = sphi 0, %s130
      %s134 = sphi 0, %s133
      %s150 = sphi 0, %s134
      %s158 = sphi 0, %s160
      %s161 = sphi 0, %s158
      %s162 = sphi 0, %s161
      %s178 = sphi 0, %s162
      %s186 = sphi 0, %s188
      %s189 = sphi 0, %s186
      %s190 = sphi 0, %s189
      %s206 = sphi 0, %s190
    $region4: #{tpu_custom_call.1} parent=1 // loop_header_branch
      %21 = sbr.rel (%p19) target = $region8
    $region5: #{tpu_custom_call.1} parent=1 // loop_body
      %s23 = ssub.s32 %s18, 1
      %s24 = ssub.s32 %s18, 2
      %s34 = sadd.s32 1, %s27
      %p35 = scmp.ge.s32.totalorder %s34, 1
      %s36 = scalar_select %p35, 0, %s34
      %s37 = sadd.s32 1, %s26
      %s38 = scalar_select %p35, %s37, %s26
      %p39 = scmp.ge.s32.totalorder %s38, 2
      %s40 = scalar_select %p39, 0, %s38
      %s41 = sadd.s32 1, %s25
      %s42 = scalar_select %p39, %s41, %s25
      %p43 = scmp.ge.s32.totalorder %s42, 1
      %s44 = scalar_select %p43, 0, %s42
      %s45 = sadd.s32 %s25, %s27
      %s46 = sadd.s32 %s44, %s36
      %s47 = ssub.s32 %s26, %s40
      %s48 = ssub.s32 %s45, %s46
      %s49 = sor.u32 %s47, %s48
      %p50 = scmp.eq.s32.totalorder %s49, 0
      %s52 = sadd.s32 %s51, 1
      %s53 = scalar_select %p50, %s51, %s52
      %p56 = pneg %p50
      %p57 = scmp.eq.s32.totalorder %s18, 1
      %p58 = por %p56, %p57
      %p59 = scmp.ne.s32.totalorder %s51, %s54
      %p60 = scmp.eq.s32.totalorder %s18, 0
      %p61 = por %p59, %p60
      %p62 = scmp.ne.s32.totalorder %s51, %s54
      %p63 = scmp.eq.s32.totalorder %s23, 1
      %p64 = por %p62, %p63
      %p65 = scmp.ne.s32.totalorder %s54, %s55
      %p66 = scmp.eq.s32.totalorder %s23, 0
      %p67 = por %p65, %p66
      %p68 = scmp.ne.s32.totalorder %s54, %s55
      %p69 = scmp.eq.s32.totalorder %s24, 1
      %p70 = por %p68, %p69
      %p72 = scmp.ne.s32.totalorder %s55, %s71
      %p73 = scmp.eq.s32.totalorder %s24, 0
      %p74 = por %p72, %p73
      %s75 = sadd.s32 %s25, %s27
      %s76 = sadd.s32 %s44, %s36
      %s77 = ssub.s32 %s26, %s40
      %s78 = ssub.s32 %s75, %s76
      %s79 = sor.u32 %s77, %s78
      %p80 = scmp.eq.s32.totalorder %s79, 0
      %s82 = sadd.s32 %s81, 1
      %s83 = scalar_select %p80, %s81, %s82
      %p86 = pneg %p80
      %p87 = scmp.eq.s32.totalorder %s18, 1
      %p88 = por %p86, %p87
      %p89 = scmp.ne.s32.totalorder %s81, %s84
      %p90 = scmp.eq.s32.totalorder %s18, 0
      %p91 = por %p89, %p90
      %p92 = scmp.ne.s32.totalorder %s81, %s84
      %p93 = scmp.eq.s32.totalorder %s23, 1
      %p94 = por %p92, %p93
      %p95 = scmp.ne.s32.totalorder %s84, %s85
      %p96 = scmp.eq.s32.totalorder %s23, 0
      %p97 = por %p95, %p96
      %p98 = scmp.ne.s32.totalorder %s84, %s85
      %p99 = scmp.eq.s32.totalorder %s24, 1
      %p100 = por %p98, %p99
      %p102 = scmp.ne.s32.totalorder %s85, %s101
      %p103 = scmp.eq.s32.totalorder %s24, 0
      %p104 = por %p102, %p103
      %s106 = sadd.s32 %s105, 1
      %p109 = scmp.eq.s32.totalorder %s18, 1
      %p110 = scmp.ne.s32.totalorder %s105, %s107
      %p111 = scmp.eq.s32.totalorder %s18, 0
      %p112 = por %p110, %p111
      %p113 = scmp.ne.s32.totalorder %s105, %s107
      %p114 = scmp.eq.s32.totalorder %s23, 1
      %p115 = por %p113, %p114
      %p116 = scmp.ne.s32.totalorder %s107, %s108
      %p117 = scmp.eq.s32.totalorder %s23, 0
      %p118 = por %p116, %p117
      %p119 = scmp.ne.s32.totalorder %s107, %s108
      %p120 = scmp.eq.s32.totalorder %s24, 1
      %p121 = por %p119, %p120
      %p123 = scmp.ne.s32.totalorder %s108, %s122
      %p124 = scmp.eq.s32.totalorder %s24, 0
      %p125 = por %p123, %p124
      %s126 = ssub.s32 %s25, %s44
      %s127 = ssub.s32 %s26, %s40
      %s128 = sor.u32 %s126, %s127
      %p129 = scmp.eq.s32.totalorder %s128, 0
      %s131 = sadd.s32 %s130, 1
      %s132 = scalar_select %p129, %s130, %s131
      %p135 = pneg %p129
      %p136 = scmp.eq.s32.totalorder %s18, 1
      %p137 = por %p135, %p136
      %p138 = scmp.ne.s32.totalorder %s130, %s133
      %p139 = scmp.eq.s32.totalorder %s18, 0
      %p140 = por %p138, %p139
      %p141 = scmp.ne.s32.totalorder %s130, %s133
      %p142 = scmp.eq.s32.totalorder %s23, 1
      %p143 = por %p141, %p142
      %p144 = scmp.ne.s32.totalorder %s133, %s134
      %p145 = scmp.eq.s32.totalorder %s23, 0
      %p146 = por %p144, %p145
      %p147 = scmp.ne.s32.totalorder %s133, %s134
      %p148 = scmp.eq.s32.totalorder %s24, 1
      %p149 = por %p147, %p148
      %p151 = scmp.ne.s32.totalorder %s134, %s150
      %p152 = scmp.eq.s32.totalorder %s24, 0
      %p153 = por %p151, %p152
      %s154 = ssub.s32 %s25, %s44
      %s155 = ssub.s32 %s26, %s40
      %s156 = sor.u32 %s154, %s155
      %p157 = scmp.eq.s32.totalorder %s156, 0
      %s159 = sadd.s32 %s158, 1
      %s160 = scalar_select %p157, %s158, %s159
      %p163 = pneg %p157
      %p164 = scmp.eq.s32.totalorder %s18, 1
      %p165 = por %p163, %p164
      %p166 = scmp.ne.s32.totalorder %s158, %s161
      %p167 = scmp.eq.s32.totalorder %s18, 0
      %p168 = por %p166, %p167
      %p169 = scmp.ne.s32.totalorder %s158, %s161
      %p170 = scmp.eq.s32.totalorder %s23, 1
      %p171 = por %p169, %p170
      %p172 = scmp.ne.s32.totalorder %s161, %s162
      %p173 = scmp.eq.s32.totalorder %s23, 0
      %p174 = por %p172, %p173
      %p175 = scmp.ne.s32.totalorder %s161, %s162
      %p176 = scmp.eq.s32.totalorder %s24, 1
      %p177 = por %p175, %p176
      %p179 = scmp.ne.s32.totalorder %s162, %s178
      %p180 = scmp.eq.s32.totalorder %s24, 0
      %p181 = por %p179, %p180
      %s182 = ssub.s32 %s25, %s44
      %s183 = ssub.s32 %s26, %s40
      %s184 = sor.u32 %s182, %s183
      %p185 = scmp.eq.s32.totalorder %s184, 0
      %s187 = sadd.s32 %s186, 1
      %s188 = scalar_select %p185, %s186, %s187
      %p191 = pneg %p185
      %p192 = scmp.eq.s32.totalorder %s18, 1
      %p193 = por %p191, %p192
      %p194 = scmp.ne.s32.totalorder %s186, %s189
      %p195 = scmp.eq.s32.totalorder %s18, 0
      %p196 = por %p194, %p195
      %p197 = scmp.ne.s32.totalorder %s186, %s189
      %p198 = scmp.eq.s32.totalorder %s23, 1
      %p199 = por %p197, %p198
      %p200 = scmp.ne.s32.totalorder %s189, %s190
      %p201 = scmp.eq.s32.totalorder %s23, 0
      %p202 = por %p200, %p201
      %p203 = scmp.ne.s32.totalorder %s189, %s190
      %p204 = scmp.eq.s32.totalorder %s24, 1
      %p205 = por %p203, %p204
      %p207 = scmp.ne.s32.totalorder %s190, %s206
      %p208 = scmp.eq.s32.totalorder %s24, 0
      %p209 = por %p207, %p208
      %p210 = scmp.le.s32.totalorder 1, %s18
      %p211 = scmp.lt.s32.totalorder %s18, 3
      %p212 = pnand %p210, %p211
      %p213 = pneg %p212
      // Predicated region
      $region9: #{tpu_custom_call.1} parent=5 // pred_check
        _
      $region10: #{tpu_custom_call.1} parent=5 // pred_check_branch
        %215 = sbr.rel (%p212) target = $region12
      $region11: #{tpu_custom_call.1} parent=5 // pred_region
        %s216 = ssub.s32 %s18, 1
        // Predicated region
        $region13: #{tpu_custom_call.1} parent=11 // pred_check
          %p217 = pneg %p118
        $region14: #{tpu_custom_call.1} parent=11 // pred_check_branch
          %219 = sbr.rel (%p217) target = $region16
        $region15: #{tpu_custom_call.1} parent=11 // pred_region
          %221 = vsyncadd [#allocation8], 0
          %s222 = sshll.u32 %s2, 4
          %s223 = int_to_ptr.hbm [resolvable:$true] %s222
          %s224 = sshll.u32 [#allocation9], 4
          %s225 = int_to_ptr.vmem [resolvable:$true] %s224
          %230 = dma.hbm_to_vmem [thread:$0]  %s223, 64, %s225, [#allocation8], 16, 16, 1
        $region16: #{tpu_custom_call.1} parent=11 // pred_fallthru
          _
      $region12: #{tpu_custom_call.1} parent=5 // pred_fallthru
        _
      %p231 = scmp.lt.s32.totalorder %s18, 2
      // Predicated region
      $region17: #{tpu_custom_call.1} parent=5 // pred_check
        %p232 = pneg %p231
      $region18: #{tpu_custom_call.1} parent=5 // pred_check_branch
        %234 = sbr.rel (%p232) target = $region20
      $region19: #{tpu_custom_call.1} parent=5 // pred_region
        // Predicated region
        $region21: #{tpu_custom_call.1} parent=19 // pred_check
          %p235 = pneg %p61
        $region22: #{tpu_custom_call.1} parent=19 // pred_check_branch
          %237 = sbr.rel (%p235) target = $region24
        $region23: #{tpu_custom_call.1} parent=19 // pred_region
          %s238 = sand.u32 %s51, 1
          %s239 = scalar_lea.sflag [#allocation6], %s238
          %s240 = sand.u32 %s51, 1
          %s241 = smul.addr %s240, 32
          %s242 = scalar_lea.vmem [#allocation5], %s241
          %s243 = sadd.s32 %s25, %s27
          %s244 = smul.u32 2, %s243
          %246 = vsyncadd %s239, 0
          %s247 = smul.addr %s26, 8
          %s248 = sadd.s32 %s244, %s247
          %s249 = smul.addr %s248, 4
          %s250 = scalar_lea.hbm %s0, %s249
          %s251 = sshll.u32 %s250, 4
          %s252 = int_to_ptr.hbm [resolvable:$true] %s251
          %s253 = sshll.u32 %s242, 4
          %s254 = int_to_ptr.vmem [resolvable:$true] %s253
          %259 = dma.hbm_to_vmem [thread:$0]  %s252, 512, %s254, %s239, 64, 64, 4
        $region24: #{tpu_custom_call.1} parent=19 // pred_fallthru
          _
        // Predicated region
        $region25: #{tpu_custom_call.1} parent=19 // pred_check
          %p260 = pneg %p91
        $region26: #{tpu_custom_call.1} parent=19 // pred_check_branch
          %262 = sbr.rel (%p260) target = $region28
        $region27: #{tpu_custom_call.1} parent=19 // pred_region
          %s263 = sand.u32 %s18, 1
          %s264 = scalar_lea.sflag [#allocation8], %s263
          %s265 = sand.u32 %s81, 1
          %s266 = smul.addr %s265, 16
          %s267 = scalar_lea.vmem [#allocation7], %s266
          %s268 = sadd.s32 %s25, %s27
          %s269 = smul.u32 2, %s268
          %271 = vsyncadd %s264, 0
          %s272 = smul.addr %s26, 2
          %s273 = sadd.s32 %s269, %s272
          %s274 = smul.addr %s273, 8
          %s275 = scalar_lea.hbm %s1, %s274
          %s276 = sshll.u32 %s275, 4
          %s277 = int_to_ptr.hbm [resolvable:$true] %s276
          %s278 = sshll.u32 %s267, 4
          %s279 = int_to_ptr.vmem [resolvable:$true] %s278
          %284 = dma.hbm_to_vmem [thread:$0]  %s277, 256, %s279, %s264, 128, 128, 8
        $region28: #{tpu_custom_call.1} parent=19 // pred_fallthru
          _
      $region20: #{tpu_custom_call.1} parent=5 // pred_fallthru
        _
      %p285 = scmp.le.s32.totalorder 1, %s18
      %p286 = scmp.lt.s32.totalorder %s18, 3
      %p287 = pnand %p285, %p286
      %p288 = pneg %p287
      // Predicated region
      $region29: #{tpu_custom_call.1} parent=5 // pred_check
        _
      $region30: #{tpu_custom_call.1} parent=5 // pred_check_branch
        %290 = sbr.rel (%p287) target = $region32
      $region31: #{tpu_custom_call.1} parent=5 // pred_region
        %s291 = ssub.s32 %s18, 1
        %s292 = sand.u32 %s54, 1
        %s293 = scalar_lea.sflag [#allocation6], %s292
        %s294 = sand.u32 %s54, 1
        %s295 = smul.addr %s294, 32
        %s296 = scalar_lea.vmem [#allocation5], %s295
        // Predicated region
        $region33: #{tpu_custom_call.1} parent=31 // pred_check
          %p297 = pneg %p67
        $region34: #{tpu_custom_call.1} parent=31 // pred_check_branch
          %299 = sbr.rel (%p297) target = $region36
        $region35: #{tpu_custom_call.1} parent=31 // pred_region
          %301 = dma.done %s293, 512
        $region36: #{tpu_custom_call.1} parent=31 // pred_fallthru
          _
        %s302 = sand.u32 %s23, 1
        %s303 = scalar_lea.sflag [#allocation8], %s302
        %s304 = sand.u32 %s84, 1
        %s305 = smul.addr %s304, 16
        %s306 = scalar_lea.vmem [#allocation7], %s305
        // Predicated region
        $region37: #{tpu_custom_call.1} parent=31 // pred_check
          %p307 = pneg %p97
        $region38: #{tpu_custom_call.1} parent=31 // pred_check_branch
          %309 = sbr.rel (%p307) target = $region40
        $region39: #{tpu_custom_call.1} parent=31 // pred_region
          %311 = dma.done %s303, 256
        $region40: #{tpu_custom_call.1} parent=31 // pred_fallthru
          _
        // Predicated region
        $region41: #{tpu_custom_call.1} parent=31 // pred_check
          %p312 = pneg %p118
        $region42: #{tpu_custom_call.1} parent=31 // pred_check_branch
          %314 = sbr.rel (%p312) target = $region44
        $region43: #{tpu_custom_call.1} parent=31 // pred_region
          %316 = dma.done [#allocation8], 64
        $region44: #{tpu_custom_call.1} parent=31 // pred_fallthru
          _
        %s317 = sand.u32 %s54, 1
        %s318 = scalar_lea.sflag [#allocation6], %s317
        %s319 = sand.u32 %s54, 1
        %s320 = smul.addr %s319, 32
        %s321 = scalar_lea.vmem [#allocation5], %s320
        %p322 = pneg %p67
        %p323 = pneg %p64
        %s324 = sand.u32 %s23, 1
        %s325 = scalar_lea.sflag [#allocation8], %s324
        %s326 = sand.u32 %s84, 1
        %s327 = smul.addr %s326, 16
        %s328 = scalar_lea.vmem [#allocation7], %s327
        %p329 = pneg %p97
        %p330 = pneg %p94
        %p331 = pneg %p118
        %p332 = pneg %p115
        %p333 = pneg %p146
        %p334 = pneg %p143
        %p335 = scmp.lt.s32.totalorder %s28, 0
        %s336 = scalar_select %p335, %s28, 0
        %p337 = scmp.lt.s32.totalorder %s29, 1
        %s338 = scalar_select %p337, %s29, 1
        %s339 = smul.addr %s336, 2
        %s340 = sadd.s32 %s338, %s339
        %s341 = smul.addr %s340, 4
        %s342 = scalar_lea.vmem %s3, %s341
        %p343 = pneg %p174
        %p344 = pneg %p171
        %p345 = scmp.lt.s32.totalorder %s28, 0
        %s346 = scalar_select %p345, %s28, 0
        %p347 = scmp.lt.s32.totalorder %s29, 1
        %s348 = scalar_select %p347, %s29, 1
        %s349 = smul.addr %s346, 2
        %s350 = sadd.s32 %s348, %s349
        %s351 = smul.addr %s350, 4
        %s352 = scalar_lea.vmem %s4, %s351
        %p353 = pneg %p202
        %p354 = pneg %p199
        %p355 = scmp.lt.s32.totalorder %s28, 0
        %s356 = scalar_select %p355, %s28, 0
        %p357 = scmp.lt.s32.totalorder %s29, 1
        %s358 = scalar_select %p357, %s29, 1
        %s359 = smul.addr %s356, 2
        %s360 = sadd.s32 %s358, %s359
        %s361 = smul.addr %s360, 4
        %s362 = scalar_lea.vmem %s5, %s361
        %s363 = sadd.s32 %s28, %s30
        %s364 = smul.u32 2, %s363
        %s365 = sadd.s32 %s28, %s30
        %s366 = smul.u32 2, %s365
        %p367 = scmp.lt.s32.totalorder %s28, 0
        %s368 = scalar_select %p367, %s28, 0
        %p369 = scmp.lt.s32.totalorder %s29, 1
        %s370 = scalar_select %p369, %s29, 1
        %s371 = smul.addr %s368, 2
        %s372 = sadd.s32 %s370, %s371
        %s373 = smul.addr %s372, 4
        %s374 = scalar_lea.vmem %s3, %s373
        %p375 = scmp.lt.s32.totalorder %s28, 0
        %s376 = scalar_select %p375, %s28, 0
        %p377 = scmp.lt.s32.totalorder %s29, 1
        %s378 = scalar_select %p377, %s29, 1
        %s379 = smul.addr %s376, 2
        %s380 = sadd.s32 %s378, %s379
        %s381 = smul.addr %s380, 4
        %s382 = scalar_lea.vmem %s4, %s381
        %p383 = scmp.lt.s32.totalorder %s28, 0
        %s384 = scalar_select %p383, %s28, 0
        %p385 = scmp.lt.s32.totalorder %s29, 1
        %s386 = scalar_select %p385, %s29, 1
        %s387 = smul.addr %s384, 2
        %s388 = sadd.s32 %s386, %s387
        %s389 = smul.addr %s388, 4
        %s390 = scalar_lea.vmem %s5, %s389
        %p391 = scmp.eq.s32.totalorder %s30, 0
        // Predicated region
        $region45: #{tpu_custom_call.1} parent=31 // pred_check
          %p392 = pneg %p391
        $region46: #{tpu_custom_call.1} parent=31 // pred_check_branch
          %394 = sbr.rel (%p392) target = $region48
        $region47: #{tpu_custom_call.1} parent=31 // pred_region
          %395 = vst [vmem:[#allocation2] sm:$0xff] 0.0
          %396 = vst [vmem:[#allocation2 + $0x8] sm:$0xff] 0.0
          %397 = vst [vmem:[#allocation2 + $0x10] sm:$0xff] 0.0
          %398 = vst [vmem:[#allocation2 + $0x18] sm:$0xff] 0.0
          %399 = vst [vmem:[#allocation3] sm:$0xff] 0.0
          %400 = vst [vmem:[#allocation3 + $0x8] sm:$0xff] 0.0
          %401 = vst [vmem:[#allocation3 + $0x10] sm:$0xff] 0.0
          %402 = vst [vmem:[#allocation3 + $0x18] sm:$0xff] 0.0
          %403 = vst [vmem:[#allocation4] sm:$0xff] 0.0
          %404 = vst [vmem:[#allocation4 + $0x8] sm:$0xff] 0.0
          %405 = vst [vmem:[#allocation4 + $0x10] sm:$0xff] 0.0
          %406 = vst [vmem:[#allocation4 + $0x18] sm:$0xff] 0.0
        $region48: #{tpu_custom_call.1} parent=31 // pred_fallthru
          _
        %v407 = vld [vmem:[%s296] sm:$0xf]
        %v408 = vld [vmem:[%s296 + $0x4] sm:$0xf]
        %v409 = vld [vmem:[%s296 + $0x8] sm:$0xf]
        %v410 = vld [vmem:[%s296 + $0xc] sm:$0xf]
        %v411 = vld [vmem:[%s296 + $0x10] sm:$0xf]
        %v412 = vld [vmem:[%s296 + $0x14] sm:$0xf]
        %v413 = vld [vmem:[%s296 + $0x18] sm:$0xf]
        %v414 = vld [vmem:[%s296 + $0x1c] sm:$0xf]
        %v415 = vunpack.c.l.bf16 %v407
        %v416 = vunpack.c.l.bf16 %v408
        %v417 = vunpack.c.l.bf16 %v409
        %v418 = vunpack.c.l.bf16 %v410
        %v419 = vunpack.c.l.bf16 %v411
        %v420 = vunpack.c.l.bf16 %v412
        %v421 = vunpack.c.l.bf16 %v413
        %v422 = vunpack.c.l.bf16 %v414
        %v423 = vld [vmem:[%s306] sm:$0xff]
        %v424 = vld [vmem:[%s306 + $0x8] sm:$0xff]
        %v425 = vld [vmem:[#allocation9] sm:$0x1]
        %v426 = vld [vmem:[#allocation9 + $0x1] sm:$0x1]
        %v427 = vld [vmem:[#allocation9 + $0x2] sm:$0x1]
        %v428 = vld [vmem:[#allocation9 + $0x3] sm:$0x1]
        %v429 = vmax.f32 %v415, %v419
        %v430 = vmax.f32 %v417, %v421
        %v431 = vmax.f32 %v429, %v430
        %v432 = vmax.f32 %v416, %v420
        %v433 = vmax.f32 %v418, %v422
        %v434 = vmax.f32 %v432, %v433
        %v435 = vsub.f32 %v415, %v431
        %v436 = vsub.f32 %v416, %v434
        %v437 = vsub.f32 %v417, %v431
        %v438 = vsub.f32 %v418, %v434
        %v439 = vsub.f32 %v419, %v431
        %v440 = vsub.f32 %v420, %v434
        %v441 = vsub.f32 %v421, %v431
        %v442 = vsub.f32 %v422, %v434
        %v443 = vmul.f32 %v435, 1.442695
        %v444 = vpow.pop %v443
        %v445 = vmul.f32 %v436, 1.442695
        %v446 = vpow.pop %v445
        %v447 = vmul.f32 %v437, 1.442695
        %v448 = vpow.pop %v447
        %v449 = vmul.f32 %v438, 1.442695
        %v450 = vpow.pop %v449
        %v451 = vmul.f32 %v439, 1.442695
        %v452 = vpow.pop %v451
        %v453 = vmul.f32 %v440, 1.442695
        %v454 = vpow.pop %v453
        %v455 = vmul.f32 %v441, 1.442695
        %v456 = vpow.pop %v455
        %v457 = vmul.f32 %v442, 1.442695
        %v458 = vpow.pop %v457
        %v459 = vadd.f32 %v444, %v448
        %v460 = vadd.f32 %v459, %v452
        %v461 = vadd.f32 %v460, %v456
        %v462 = vadd.f32 %v446, %v450
        %v463 = vadd.f32 %v462, %v454
        %v464 = vadd.f32 %v463, %v458
        %v465 = vrcp.pop %v461
        %v466 = vrcp.pop %v464
        %v467 = vmul.f32 %v444, %v465
        %v468 = vmul.f32 %v446, %v466
        %v469 = vmul.f32 %v448, %v465
        %v470 = vmul.f32 %v450, %v466
        %v471 = vmul.f32 %v452, %v465
        %v472 = vmul.f32 %v454, %v466
        %v473 = vmul.f32 %v456, %v465
        %v474 = vmul.f32 %v458, %v466
        %v475 = vperm.slane %v425, 0
        %v476 = vperm.slane %v426, 0
        %v477 = vperm.slane %v427, 0
        %v478 = vperm.slane %v428, 0
        %vm479 = vcmp.eq.s32.totalorder %v423, %v475
        %vm480 = vcmp.eq.s32.totalorder %v424, %v475
        %vm481 = vcmp.eq.s32.totalorder %v423, %v476
        %vm482 = vcmp.eq.s32.totalorder %v424, %v476
        %vm483 = vcmp.eq.s32.totalorder %v423, %v477
        %vm484 = vcmp.eq.s32.totalorder %v424, %v477
        %vm485 = vcmp.eq.s32.totalorder %v423, %v478
        %vm486 = vcmp.eq.s32.totalorder %v424, %v478
        %s487 = sadd.s32 %s28, %s30
        %s488 = smul.u32 %s487, 2048
        %s489 = sadd.s32 %s488, 2048
        %p490 = scmp.le.s32.totalorder %s489, 256
        // Predicated region
        $region49: #{tpu_custom_call.1} parent=31 // pred_check
          %p491 = pneg %p490
        $region50: #{tpu_custom_call.1} parent=31 // pred_check_branch
          %493 = sbr.rel (%p491) target = $region52
        $region51: #{tpu_custom_call.1} parent=31 // pred_region
          %v494 = vsel %vm479, 1, 0
          %v495 = vsel %vm480, 1, 0
          %v496 = vsel %vm481, 1, 0
          %v497 = vsel %vm482, 1, 0
          %v498 = vsel %vm483, 1, 0
          %v499 = vsel %vm484, 1, 0
          %v500 = vsel %vm485, 1, 0
          %v501 = vsel %vm486, 1, 0
          %v502 = vcvt.s32.f32 %v494
          %v503 = vcvt.s32.f32 %v495
          %v504 = vcvt.s32.f32 %v496
          %v505 = vcvt.s32.f32 %v497
          %v506 = vcvt.s32.f32 %v498
          %v507 = vcvt.s32.f32 %v499
          %v508 = vcvt.s32.f32 %v500
          %v509 = vcvt.s32.f32 %v501
          %v510 = vld [vmem:[#allocation2] sm:$0xff]
          %v511 = vld [vmem:[#allocation2 + $0x8] sm:$0xff]
          %v512 = vld [vmem:[#allocation2 + $0x10] sm:$0xff]
          %v513 = vld [vmem:[#allocation2 + $0x18] sm:$0xff]
          %v514 = vmul.f32 %v467, %v502
          %v515 = vmul.f32 %v468, %v503
          %v516 = vmul.f32 %v469, %v504
          %v517 = vmul.f32 %v470, %v505
          %v518 = vmul.f32 %v471, %v506
          %v519 = vmul.f32 %v472, %v507
          %v520 = vmul.f32 %v473, %v508
          %v521 = vmul.f32 %v474, %v509
          %v522 = vadd.f32 %v514, %v515
          %v523 = vadd.f32 %v516, %v517
          %v524 = vadd.f32 %v518, %v519
          %v525 = vadd.f32 %v520, %v521
          %v526 = vadd.f32 %v510, %v522
          %v527 = vadd.f32 %v511, %v523
          %v528 = vadd.f32 %v512, %v524
          %v529 = vadd.f32 %v513, %v525
          %530 = vst [vmem:[#allocation2] sm:$0xff] %v526
          %531 = vst [vmem:[#allocation2 + $0x8] sm:$0xff] %v527
          %532 = vst [vmem:[#allocation2 + $0x10] sm:$0xff] %v528
          %533 = vst [vmem:[#allocation2 + $0x18] sm:$0xff] %v529
          %v534 = vld [vmem:[#allocation3] sm:$0xff]
          %v535 = vld [vmem:[#allocation3 + $0x8] sm:$0xff]
          %v536 = vld [vmem:[#allocation3 + $0x10] sm:$0xff]
          %v537 = vld [vmem:[#allocation3 + $0x18] sm:$0xff]
          %v538 = vadd.f32 %v467, %v468
          %v539 = vadd.f32 %v469, %v470
          %v540 = vadd.f32 %v471, %v472
          %v541 = vadd.f32 %v473, %v474
          %v542 = vadd.f32 %v534, %v538
          %v543 = vadd.f32 %v535, %v539
          %v544 = vadd.f32 %v536, %v540
          %v545 = vadd.f32 %v537, %v541
          %546 = vst [vmem:[#allocation3] sm:$0xff] %v542
          %547 = vst [vmem:[#allocation3 + $0x8] sm:$0xff] %v543
          %548 = vst [vmem:[#allocation3 + $0x10] sm:$0xff] %v544
          %549 = vst [vmem:[#allocation3 + $0x18] sm:$0xff] %v545
          %v550 = vld [vmem:[#allocation4] sm:$0xff]
          %v551 = vld [vmem:[#allocation4 + $0x8] sm:$0xff]
          %v552 = vld [vmem:[#allocation4 + $0x10] sm:$0xff]
          %v553 = vld [vmem:[#allocation4 + $0x18] sm:$0xff]
          %v554 = vadd.f32 %v502, %v503
          %v555 = vadd.f32 %v504, %v505
          %v556 = vadd.f32 %v506, %v507
          %v557 = vadd.f32 %v508, %v509
          %v558 = vadd.f32 %v550, %v554
          %v559 = vadd.f32 %v551, %v555
          %v560 = vadd.f32 %v552, %v556
          %v561 = vadd.f32 %v553, %v557
          %562 = vst [vmem:[#allocation4] sm:$0xff] %v558
          %563 = vst [vmem:[#allocation4 + $0x8] sm:$0xff] %v559
          %564 = vst [vmem:[#allocation4 + $0x10] sm:$0xff] %v560
          %565 = vst [vmem:[#allocation4 + $0x18] sm:$0xff] %v561
        $region52: #{tpu_custom_call.1} parent=31 // pred_fallthru
          _
        %p566 = scmp.gt.s32.totalorder %s489, 256
        // Predicated region
        $region53: #{tpu_custom_call.1} parent=31 // pred_check
          %p567 = pneg %p566
        $region54: #{tpu_custom_call.1} parent=31 // pred_check_branch
          %569 = sbr.rel (%p567) target = $region56
        $region55: #{tpu_custom_call.1} parent=31 // pred_region
          %v570 = vlaneseq
          %v571 = vshrl.u32 %v570, 7
          %v572 = vadd.s32 %v571, 8
          %v573 = vlaneseq
          %v574 = vand.u32 %v573, 127
          %v575 = vmul.u32 %v571, 128
          %v576 = vmul.u32 %v572, 128
          %v577 = vstv %s488
          %v578 = vadd.s32 %v577, %v575
          %v579 = vadd.s32 %v577, %v576
          %v580 = vadd.s32 %v578, %v574
          %v581 = vadd.s32 %v579, %v574
          %vm582 = vcmp.lt.s32.totalorder %v580, 256
          %vm583 = vcmp.lt.s32.totalorder %v581, 256
          %v584 = vsel %vm582, 1, 0
          %v585 = vsel %vm583, 1, 0
          %vm586 = vcmp.eq.s32.totalorder %v584, 1
          %vm587 = vcmp.eq.s32.totalorder %v585, 1
          %v588 = vsel %vm586, %v467, 0.0
          %v589 = vsel %vm587, %v468, 0.0
          %v590 = vsel %vm586, %v469, 0.0
          %v591 = vsel %vm587, %v470, 0.0
          %v592 = vsel %vm586, %v471, 0.0
          %v593 = vsel %vm587, %v472, 0.0
          %v594 = vsel %vm586, %v473, 0.0
          %v595 = vsel %vm587, %v474, 0.0
          %vm596 = vmand %vm479, %vm586
          %vm597 = vmand %vm480, %vm587
          %vm598 = vmand %vm481, %vm586
          %vm599 = vmand %vm482, %vm587
          %vm600 = vmand %vm483, %vm586
          %vm601 = vmand %vm484, %vm587
          %vm602 = vmand %vm485, %vm586
          %vm603 = vmand %vm486, %vm587
          %v604 = vsel %vm596, 1, 0
          %v605 = vsel %vm597, 1, 0
          %v606 = vsel %vm598, 1, 0
          %v607 = vsel %vm599, 1, 0
          %v608 = vsel %vm600, 1, 0
          %v609 = vsel %vm601, 1, 0
          %v610 = vsel %vm602, 1, 0
          %v611 = vsel %vm603, 1, 0
          %v612 = vcvt.s32.f32 %v604
          %v613 = vcvt.s32.f32 %v605
          %v614 = vcvt.s32.f32 %v606
          %v615 = vcvt.s32.f32 %v607
          %v616 = vcvt.s32.f32 %v608
          %v617 = vcvt.s32.f32 %v609
          %v618 = vcvt.s32.f32 %v610
          %v619 = vcvt.s32.f32 %v611
          %v620 = vld [vmem:[#allocation2] sm:$0xff]
          %v621 = vld [vmem:[#allocation2 + $0x8] sm:$0xff]
          %v622 = vld [vmem:[#allocation2 + $0x10] sm:$0xff]
          %v623 = vld [vmem:[#allocation2 + $0x18] sm:$0xff]
          %v624 = vmul.f32 %v588, %v612
          %v625 = vmul.f32 %v589, %v613
          %v626 = vmul.f32 %v590, %v614
          %v627 = vmul.f32 %v591, %v615
          %v628 = vmul.f32 %v592, %v616
          %v629 = vmul.f32 %v593, %v617
          %v630 = vmul.f32 %v594, %v618
          %v631 = vmul.f32 %v595, %v619
          %v632 = vadd.f32 %v624, %v625
          %v633 = vadd.f32 %v626, %v627
          %v634 = vadd.f32 %v628, %v629
          %v635 = vadd.f32 %v630, %v631
          %v636 = vadd.f32 %v620, %v632
          %v637 = vadd.f32 %v621, %v633
          %v638 = vadd.f32 %v622, %v634
          %v639 = vadd.f32 %v623, %v635
          %640 = vst [vmem:[#allocation2] sm:$0xff] %v636
          %641 = vst [vmem:[#allocation2 + $0x8] sm:$0xff] %v637
          %642 = vst [vmem:[#allocation2 + $0x10] sm:$0xff] %v638
          %643 = vst [vmem:[#allocation2 + $0x18] sm:$0xff] %v639
          %v644 = vld [vmem:[#allocation3] sm:$0xff]
          %v645 = vld [vmem:[#allocation3 + $0x8] sm:$0xff]
          %v646 = vld [vmem:[#allocation3 + $0x10] sm:$0xff]
          %v647 = vld [vmem:[#allocation3 + $0x18] sm:$0xff]
          %v648 = vadd.f32 %v588, %v589
          %v649 = vadd.f32 %v590, %v591
          %v650 = vadd.f32 %v592, %v593
          %v651 = vadd.f32 %v594, %v595
          %v652 = vadd.f32 %v644, %v648
          %v653 = vadd.f32 %v645, %v649
          %v654 = vadd.f32 %v646, %v650
          %v655 = vadd.f32 %v647, %v651
          %656 = vst [vmem:[#allocation3] sm:$0xff] %v652
          %657 = vst [vmem:[#allocation3 + $0x8] sm:$0xff] %v653
          %658 = vst [vmem:[#allocation3 + $0x10] sm:$0xff] %v654
          %659 = vst [vmem:[#allocation3 + $0x18] sm:$0xff] %v655
          %v660 = vld [vmem:[#allocation4] sm:$0xff]
          %v661 = vld [vmem:[#allocation4 + $0x8] sm:$0xff]
          %v662 = vld [vmem:[#allocation4 + $0x10] sm:$0xff]
          %v663 = vld [vmem:[#allocation4 + $0x18] sm:$0xff]
          %v664 = vadd.f32 %v612, %v613
          %v665 = vadd.f32 %v614, %v615
          %v666 = vadd.f32 %v616, %v617
          %v667 = vadd.f32 %v618, %v619
          %v668 = vadd.f32 %v660, %v664
          %v669 = vadd.f32 %v661, %v665
          %v670 = vadd.f32 %v662, %v666
          %v671 = vadd.f32 %v663, %v667
          %672 = vst [vmem:[#allocation4] sm:$0xff] %v668
          %673 = vst [vmem:[#allocation4 + $0x8] sm:$0xff] %v669
          %674 = vst [vmem:[#allocation4 + $0x10] sm:$0xff] %v670
          %675 = vst [vmem:[#allocation4 + $0x18] sm:$0xff] %v671
        $region56: #{tpu_custom_call.1} parent=31 // pred_fallthru
          _
        // Predicated region
        $region57: #{tpu_custom_call.1} parent=31 // pred_check
          %p676 = pneg %p391
        $region58: #{tpu_custom_call.1} parent=31 // pred_check_branch
          %678 = sbr.rel (%p676) target = $region60
        $region59: #{tpu_custom_call.1} parent=31 // pred_region
          %v679 = vld [vmem:[#allocation2] sm:$0xff]
          %v680 = vld [vmem:[#allocation2 + $0x8] sm:$0xff]
          %v681 = vld [vmem:[#allocation2 + $0x10] sm:$0xff]
          %v682 = vld [vmem:[#allocation2 + $0x18] sm:$0xff]
          %v683 = vrot.slane %v679, 4
          %v684 = vadd.f32 %v679, %v683
          %v685 = vrot.slane %v684, 2
          %v686 = vadd.f32 %v684, %v685
          %v687 = vrot.slane %v686, 1
          %v688 = vadd.f32 %v686, %v687
          %v689 = vrot.slane %v680, 4
          %v690 = vadd.f32 %v680, %v689
          %v691 = vrot.slane %v690, 2
          %v692 = vadd.f32 %v690, %v691
          %v693 = vrot.slane %v692, 1
          %v694 = vadd.f32 %v692, %v693
          %v695 = vrot.slane %v681, 4
          %v696 = vadd.f32 %v681, %v695
          %v697 = vrot.slane %v696, 2
          %v698 = vadd.f32 %v696, %v697
          %v699 = vrot.slane %v698, 1
          %v700 = vadd.f32 %v698, %v699
          %v701 = vrot.slane %v682, 4
          %v702 = vadd.f32 %v682, %v701
          %v703 = vrot.slane %v702, 2
          %v704 = vadd.f32 %v702, %v703
          %v705 = vrot.slane %v704, 1
          %v706 = vadd.f32 %v704, %v705
          %vm711 = vcmask 1041409
          %v712 = vsel %vm711, %v694, %v688
          %vm713 = vcmask 1042434
          %v714 = vsel %vm713, %v700, %v712
          %vm715 = vcmask 1043459
          %v716 = vsel %vm715, %v706, %v714
          %vm718 = vcmask 1043456
          %v719 = vsel %vm718, %v716, 0.0
          %720 = vadd.xlane.f32.xlu0 %v719
          %v721 = vpop.xlane.xlu0 %720
          %vm722 = vcmask 3072
          %723 = vst.msk [vmem:[%s374] sm:$0xf] %vm722, %v721
          %v724 = vld [vmem:[#allocation3] sm:$0xff]
          %v725 = vld [vmem:[#allocation3 + $0x8] sm:$0xff]
          %v726 = vld [vmem:[#allocation3 + $0x10] sm:$0xff]
          %v727 = vld [vmem:[#allocation3 + $0x18] sm:$0xff]
          %v728 = vrot.slane %v724, 4
          %v729 = vadd.f32 %v724, %v728
          %v730 = vrot.slane %v729, 2
          %v731 = vadd.f32 %v729, %v730
          %v732 = vrot.slane %v731, 1
          %v733 = vadd.f32 %v731, %v732
          %v734 = vrot.slane %v725, 4
          %v735 = vadd.f32 %v725, %v734
          %v736 = vrot.slane %v735, 2
          %v737 = vadd.f32 %v735, %v736
          %v738 = vrot.slane %v737, 1
          %v739 = vadd.f32 %v737, %v738
          %v740 = vrot.slane %v726, 4
          %v741 = vadd.f32 %v726, %v740
          %v742 = vrot.slane %v741, 2
          %v743 = vadd.f32 %v741, %v742
          %v744 = vrot.slane %v743, 1
          %v745 = vadd.f32 %v743, %v744
          %v746 = vrot.slane %v727, 4
          %v747 = vadd.f32 %v727, %v746
          %v748 = vrot.slane %v747, 2
          %v749 = vadd.f32 %v747, %v748
          %v750 = vrot.slane %v749, 1
          %v751 = vadd.f32 %v749, %v750
          %v756 = vsel %vm711, %v739, %v733
          %v757 = vsel %vm713, %v745, %v756
          %v758 = vsel %vm715, %v751, %v757
          %v760 = vsel %vm718, %v758, 0.0
          %761 = vadd.xlane.f32.xlu0 %v760
          %v762 = vpop.xlane.xlu0 %761
          %763 = vst.msk [vmem:[%s382] sm:$0xf] %vm722, %v762
          %v764 = vld [vmem:[#allocation4] sm:$0xff]
          %v765 = vld [vmem:[#allocation4 + $0x8] sm:$0xff]
          %v766 = vld [vmem:[#allocation4 + $0x10] sm:$0xff]
          %v767 = vld [vmem:[#allocation4 + $0x18] sm:$0xff]
          %v768 = vrot.slane %v764, 4
          %v769 = vadd.f32 %v764, %v768
          %v770 = vrot.slane %v769, 2
          %v771 = vadd.f32 %v769, %v770
          %v772 = vrot.slane %v771, 1
          %v773 = vadd.f32 %v771, %v772
          %v774 = vrot.slane %v765, 4
          %v775 = vadd.f32 %v765, %v774
          %v776 = vrot.slane %v775, 2
          %v777 = vadd.f32 %v775, %v776
          %v778 = vrot.slane %v777, 1
          %v779 = vadd.f32 %v777, %v778
          %v780 = vrot.slane %v766, 4
          %v781 = vadd.f32 %v766, %v780
          %v782 = vrot.slane %v781, 2
          %v783 = vadd.f32 %v781, %v782
          %v784 = vrot.slane %v783, 1
          %v785 = vadd.f32 %v783, %v784
          %v786 = vrot.slane %v767, 4
          %v787 = vadd.f32 %v767, %v786
          %v788 = vrot.slane %v787, 2
          %v789 = vadd.f32 %v787, %v788
          %v790 = vrot.slane %v789, 1
          %v791 = vadd.f32 %v789, %v790
          %v796 = vsel %vm711, %v779, %v773
          %v797 = vsel %vm713, %v785, %v796
          %v798 = vsel %vm715, %v791, %v797
          %v800 = vsel %vm718, %v798, 0.0
          %801 = vadd.xlane.f32.xlu0 %v800
          %v802 = vpop.xlane.xlu0 %801
          %803 = vst.msk [vmem:[%s390] sm:$0xf] %vm722, %v802
        $region60: #{tpu_custom_call.1} parent=31 // pred_fallthru
          _
        %p804 = scmp.lt.s32.totalorder %s28, 0
        %s805 = scalar_select %p804, %s28, 0
        %p806 = scmp.lt.s32.totalorder %s29, 1
        %s807 = scalar_select %p806, %s29, 1
        %s808 = smul.addr %s805, 2
        %s809 = sadd.s32 %s807, %s808
        %s810 = smul.addr %s809, 4
        %s811 = scalar_lea.vmem %s3, %s810
        %p812 = scmp.lt.s32.totalorder %s28, 0
        %s813 = scalar_select %p812, %s28, 0
        %p814 = scmp.lt.s32.totalorder %s29, 1
        %s815 = scalar_select %p814, %s29, 1
        %s816 = smul.addr %s813, 2
        %s817 = sadd.s32 %s815, %s816
        %s818 = smul.addr %s817, 4
        %s819 = scalar_lea.vmem %s4, %s818
        %p820 = scmp.lt.s32.totalorder %s28, 0
        %s821 = scalar_select %p820, %s28, 0
        %p822 = scmp.lt.s32.totalorder %s29, 1
        %s823 = scalar_select %p822, %s29, 1
        %s824 = smul.addr %s821, 2
        %s825 = sadd.s32 %s823, %s824
        %s826 = smul.addr %s825, 4
        %s827 = scalar_lea.vmem %s5, %s826
        // Predicated region
        $region61: #{tpu_custom_call.1} parent=31 // pred_check
          %p828 = pneg %p143
        $region62: #{tpu_custom_call.1} parent=31 // pred_check_branch
          %830 = sbr.rel (%p828) target = $region64
        $region63: #{tpu_custom_call.1} parent=31 // pred_region
          _
        $region64: #{tpu_custom_call.1} parent=31 // pred_fallthru
          _
        // Predicated region
        $region65: #{tpu_custom_call.1} parent=31 // pred_check
          %p831 = pneg %p171
        $region66: #{tpu_custom_call.1} parent=31 // pred_check_branch
          %833 = sbr.rel (%p831) target = $region68
        $region67: #{tpu_custom_call.1} parent=31 // pred_region
          _
        $region68: #{tpu_custom_call.1} parent=31 // pred_fallthru
          _
        // Predicated region
        $region69: #{tpu_custom_call.1} parent=31 // pred_check
          %p834 = pneg %p199
        $region70: #{tpu_custom_call.1} parent=31 // pred_check_branch
          %836 = sbr.rel (%p834) target = $region72
        $region71: #{tpu_custom_call.1} parent=31 // pred_region
          _
        $region72: #{tpu_custom_call.1} parent=31 // pred_fallthru
          _
      $region32: #{tpu_custom_call.1} parent=5 // pred_fallthru
        _
      %p837 = scmp.le.s32.totalorder 2, %s18
      // Predicated region
      $region73: #{tpu_custom_call.1} parent=5 // pred_check
        %p838 = pneg %p837
      $region74: #{tpu_custom_call.1} parent=5 // pred_check_branch
        %840 = sbr.rel (%p838) target = $region76
      $region75: #{tpu_custom_call.1} parent=5 // pred_region
        %s841 = ssub.s32 %s18, 2
        // Predicated region
        $region77: #{tpu_custom_call.1} parent=75 // pred_check
          %p842 = pneg %p149
        $region78: #{tpu_custom_call.1} parent=75 // pred_check_branch
          %844 = sbr.rel (%p842) target = $region80
        $region79: #{tpu_custom_call.1} parent=75 // pred_region
          %p845 = scmp.lt.s32.totalorder %s31, 0
          %s846 = scalar_select %p845, %s31, 0
          %p847 = scmp.lt.s32.totalorder %s32, 1
          %s848 = scalar_select %p847, %s32, 1
          %s849 = smul.addr %s846, 2
          %s850 = sadd.s32 %s848, %s849
          %s851 = smul.addr %s850, 4
          %s852 = scalar_lea.vmem %s3, %s851
        $region80: #{tpu_custom_call.1} parent=75 // pred_fallthru
          _
        // Predicated region
        $region81: #{tpu_custom_call.1} parent=75 // pred_check
          %p853 = pneg %p177
        $region82: #{tpu_custom_call.1} parent=75 // pred_check_branch
          %855 = sbr.rel (%p853) target = $region84
        $region83: #{tpu_custom_call.1} parent=75 // pred_region
          %p856 = scmp.lt.s32.totalorder %s31, 0
          %s857 = scalar_select %p856, %s31, 0
          %p858 = scmp.lt.s32.totalorder %s32, 1
          %s859 = scalar_select %p858, %s32, 1
          %s860 = smul.addr %s857, 2
          %s861 = sadd.s32 %s859, %s860
          %s862 = smul.addr %s861, 4
          %s863 = scalar_lea.vmem %s4, %s862
        $region84: #{tpu_custom_call.1} parent=75 // pred_fallthru
          _
        // Predicated region
        $region85: #{tpu_custom_call.1} parent=75 // pred_check
          %p864 = pneg %p205
        $region86: #{tpu_custom_call.1} parent=75 // pred_check_branch
          %866 = sbr.rel (%p864) target = $region88
        $region87: #{tpu_custom_call.1} parent=75 // pred_region
          %p867 = scmp.lt.s32.totalorder %s31, 0
          %s868 = scalar_select %p867, %s31, 0
          %p869 = scmp.lt.s32.totalorder %s32, 1
          %s870 = scalar_select %p869, %s32, 1
          %s871 = smul.addr %s868, 2
          %s872 = sadd.s32 %s870, %s871
          %s873 = smul.addr %s872, 4
          %s874 = scalar_lea.vmem %s5, %s873
        $region88: #{tpu_custom_call.1} parent=75 // pred_fallthru
          _
      $region76: #{tpu_custom_call.1} parent=5 // pred_fallthru
        _
    $region6: #{tpu_custom_call.1} parent=1 // loop_footer
      %s22 = sadd.s32 1, %s18
    $region7: #{tpu_custom_call.1} parent=1 // loop_footer_branch
      %17 = sbr.rel target = $region3
    $region8: #{tpu_custom_call.1} parent=1 // loop_exit
      _
    %875 = vsyncpa [#allocation6], 1
    %s876 = scalar_lea.sflag [#allocation6], 1
    %877 = vsyncpa %s876, 1
    %878 = vsyncpa [#allocation8], 1
    %s879 = scalar_lea.sflag [#allocation8], 1
    %880 = vsyncpa %s879, 1

</llo_original>
